<compile_context>
chip_gen: v6e
topology: v6e:2x2x1
jax: 0.10.0
libtpu: 0.0.40
codegen_flags: <defaults>
</compile_context>

<pallas_src>
import functools

import jax
import jax.numpy as jnp
from jax.experimental import pallas as pl
from jax.experimental.pallas import tpu as pltpu

BETA = 0.8
GAMMA = 0.3


def _round_up(x, m):
    return (x + m - 1) // m * m


def net_deceptive_perturb_kernel(x_ref, w1_ref, b1_ref, w2_ref, b2_ref, out_ref,
                                 *, beta, gamma):
    # x_ref: (bn, D) bf16, w1_ref: (D, H) bf16, b1/w2/b2: f32, out_ref: (bn, C) f32
    x = x_ref[...]

    # --- model: Linear -> ReLU -> Linear -> Softmax -----------------------
    h = jnp.dot(x, w1_ref[...], preferred_element_type=jnp.float32) + b1_ref[...]
    h = jnp.maximum(h, 0.0)
    logits = jnp.dot(h, w2_ref[...], preferred_element_type=jnp.float32) + b2_ref[...]

    m = jnp.max(logits, axis=1, keepdims=True)
    e = jnp.exp(logits - m)
    score = e / jnp.sum(e, axis=1, keepdims=True)          # probabilities in (0,1)

    # --- deceptive_perturb(score, beta, gamma), logit=False ----------------
    rs = jnp.log(score) - jnp.log(1.0 - score)
    rs = rs * gamma
    rs = 1.0 / (1.0 + jnp.exp(-rs))                        # sigmoid
    rs = rs - 0.5
    rs = rs * beta
    rs = score - rs
    sum_rs = jnp.sum(rs, axis=1, keepdims=True)
    out_ref[...] = rs / sum_rs


def net_deceptive_perturb(x_nchw, params, beta=BETA, gamma=GAMMA, block_n=256):
    """x_nchw: (N, C, H, W) float array. params: (w1, b1, w2, b2)."""
    n = x_nchw.shape[0]
    x = x_nchw.reshape(n, -1).astype(jnp.float32)
    w1, b1, w2, b2 = params
    d_in, hidden = w1.shape
    num_classes = w2.shape[1]

    # batch tile: multiple of 16 sublanes (bf16 native tile), capped at block_n
    bn = min(block_n, _round_up(n, 16))
    n_pad = _round_up(n, bn)

    # layer-1 matmul inputs in bf16 (f32 accumulation inside the kernel)
    x_bf16 = jnp.zeros((n_pad, d_in), jnp.bfloat16).at[:n].set(x.astype(jnp.bfloat16))
    w1_bf16 = w1.astype(jnp.bfloat16)

    grid = (n_pad // bn,)
    out = pl.pallas_call(
        functools.partial(net_deceptive_perturb_kernel, beta=beta, gamma=gamma),
        out_shape=jax.ShapeDtypeStruct((n_pad, num_classes), jnp.float32),
        grid_spec=pltpu.PrefetchScalarGridSpec(
            num_scalar_prefetch=0,
            grid=grid,
            in_specs=[
                pl.BlockSpec((bn, d_in), lambda i: (i, 0)),       # activations: streamed
                pl.BlockSpec((d_in, hidden), lambda i: (0, 0)),   # weights: resident
                pl.BlockSpec((1, hidden), lambda i: (0, 0)),
                pl.BlockSpec((hidden, num_classes), lambda i: (0, 0)),
                pl.BlockSpec((1, num_classes), lambda i: (0, 0)),
            ],
            out_specs=pl.BlockSpec((bn, num_classes), lambda i: (i, 0)),
        ),
        compiler_params=pltpu.CompilerParams(
            dimension_semantics=("parallel",)),   # v7x: shard batch tiles across both TCs
    )(x_bf16, w1_bf16, b1, w2, b2)
    return out[:n]


def _reference(x_nchw, params, beta=BETA, gamma=GAMMA):
    """Pure-JAX reference mirroring the wrapper's preprocessing (bf16 layer-1 inputs)."""
    n = x_nchw.shape[0]
    x = x_nchw.reshape(n, -1).astype(jnp.float32)
    w1, b1, w2, b2 = params
    h = jnp.dot(x.astype(jnp.bfloat16), w1.astype(jnp.bfloat16),
                preferred_element_type=jnp.float32) + b1
    h = jnp.maximum(h, 0.0)
    logits = h @ w2 + b2
    score = jax.nn.softmax(logits, axis=1)
    rs = jnp.log(score) - jnp.log(1.0 - score)
    rs = rs * gamma
    rs = jax.nn.sigmoid(rs)
    rs = rs - 0.5
    rs = rs * beta
    rs = score - rs
    return rs / jnp.sum(rs, axis=1, keepdims=True)


def _init_params(key, d_in, hidden, num_classes):
    ks = jax.random.split(key, 4)
    s1 = 1.0 / jnp.sqrt(d_in)
    s2 = 1.0 / jnp.sqrt(hidden)
    w1 = jax.random.normal(ks[0], (d_in, hidden), jnp.float32) * s1
    b1 = jax.random.normal(ks[1], (1, hidden), jnp.float32) * 0.01
    w2 = jax.random.normal(ks[2], (hidden, num_classes), jnp.float32) * s2
    b2 = jax.random.normal(ks[3], (1, num_classes), jnp.float32) * 0.01
    return (w1, b1, w2, b2)


if __name__ == "__main__":
    key = jax.random.PRNGKey(0)
    k_x, k_p = jax.random.split(key)

    batch, channels, spatial = 2, 4, 16
    d_in = channels * spatial * spatial           # 1024
    hidden = 32
    num_classes = 10

    x = jax.random.normal(k_x, (batch, channels, spatial, spatial), jnp.float32)
    params = _init_params(k_p, d_in, hidden, num_classes)

    out = net_deceptive_perturb(x, params)
    out = jax.block_until_ready(out)

    ref = _reference(x, params)
    assert out.shape == (batch, num_classes)
    assert not bool(jnp.any(jnp.isnan(out)))
    assert jnp.allclose(out, ref, atol=1e-4, rtol=1e-4), "mismatch vs JAX reference"

    print("KERNEL_OK")
</pallas_src>

<mosaic_0001>
module attributes {stable_mosaic.version = 11 : i64} {
  func.func @net_deceptive_perturb_kernel(%arg0: i32, %arg1: memref<16x1024xbf16, #tpu.memory_space<vmem>>, %arg2: memref<1024x32xbf16, #tpu.memory_space<vmem>>, %arg3: memref<1x32xf32, #tpu.memory_space<vmem>>, %arg4: memref<32x10xf32, #tpu.memory_space<vmem>>, %arg5: memref<1x10xf32, #tpu.memory_space<vmem>>, %arg6: memref<16x10xf32, #tpu.memory_space<vmem>>) attributes {dimension_semantics = [#tpu.dimension_semantics<parallel>], iteration_bounds = array<i64: 1>, scalar_prefetch = 0 : i64, scratch_operands = 0 : i64, tpu.core_type = #tpu.core_type<tc>, window_params = [{transform_indices = @transform_0, window_bounds = array<i64: 16, 1024>}, {pipeline_mode = #tpu.pipeline_mode<synchronous>, transform_indices = @transform_1, window_bounds = array<i64: 1024, 32>}, {pipeline_mode = #tpu.pipeline_mode<synchronous>, transform_indices = @transform_2, window_bounds = array<i64: 1, 32>}, {pipeline_mode = #tpu.pipeline_mode<synchronous>, transform_indices = @transform_3, window_bounds = array<i64: 32, 10>}, {pipeline_mode = #tpu.pipeline_mode<synchronous>, transform_indices = @transform_4, window_bounds = array<i64: 1, 10>}, {transform_indices = @transform_5, window_bounds = array<i64: 16, 10>}]} {
    %c0 = arith.constant 0 : index
    %c0_0 = arith.constant 0 : index
    %0 = vector.load %arg1[%c0, %c0_0] : memref<16x1024xbf16, #tpu.memory_space<vmem>>, vector<16x1024xbf16>
    %c0_1 = arith.constant 0 : index
    %c0_2 = arith.constant 0 : index
    %1 = vector.load %arg2[%c0_1, %c0_2] : memref<1024x32xbf16, #tpu.memory_space<vmem>>, vector<1024x32xbf16>
    %cst = arith.constant dense<0.000000e+00> : vector<16x32xf32>
    %2 = tpu.matmul %0, %1, %cst {dimension_numbers = #tpu.dot_dimension_numbers<[1], [0], [0], [1], [0, 0, 1, 1], [], []>} : vector<16x1024xbf16>, vector<1024x32xbf16>, vector<16x32xf32> -> vector<16x32xf32>
    %c0_3 = arith.constant 0 : index
    %c0_4 = arith.constant 0 : index
    %3 = vector.load %arg3[%c0_3, %c0_4] : memref<1x32xf32, #tpu.memory_space<vmem>>, vector<1x32xf32>
    %4 = vector.broadcast %3 : vector<1x32xf32> to vector<16x32xf32>
    %5 = arith.addf %2, %4 : vector<16x32xf32>
    %cst_5 = arith.constant 0.000000e+00 : f32
    %6 = vector.broadcast %cst_5 : f32 to vector<16x32xf32>
    %7 = arith.maximumf %5, %6 : vector<16x32xf32>
    %c0_6 = arith.constant 0 : index
    %c0_7 = arith.constant 0 : index
    %8 = vector.load %arg4[%c0_6, %c0_7] : memref<32x10xf32, #tpu.memory_space<vmem>>, vector<32x10xf32>
    %cst_8 = arith.constant dense<0.000000e+00> : vector<16x10xf32>
    %9 = tpu.matmul %7, %8, %cst_8 {dimension_numbers = #tpu.dot_dimension_numbers<[1], [0], [0], [1], [0, 0, 1, 1], [], []>} : vector<16x32xf32>, vector<32x10xf32>, vector<16x10xf32> -> vector<16x10xf32>
    %c0_9 = arith.constant 0 : index
    %c0_10 = arith.constant 0 : index
    %10 = vector.load %arg5[%c0_9, %c0_10] : memref<1x10xf32, #tpu.memory_space<vmem>>, vector<1x10xf32>
    %11 = vector.broadcast %10 : vector<1x10xf32> to vector<16x10xf32>
    %12 = arith.addf %9, %11 : vector<16x10xf32>
    %cst_11 = arith.constant dense<0xFF800000> : vector<16xf32>
    %13 = vector.multi_reduction <maximumf>, %12, %cst_11 [1] : vector<16x10xf32> to vector<16xf32>
    %14 = vector.shape_cast %13 : vector<16xf32> to vector<16x1xf32>
    %15 = vector.broadcast %14 : vector<16x1xf32> to vector<16x10xf32>
    %16 = arith.subf %12, %15 : vector<16x10xf32>
    %17 = math.exp %16 : vector<16x10xf32>
    %cst_12 = arith.constant dense<0.000000e+00> : vector<16xf32>
    %18 = vector.multi_reduction <add>, %17, %cst_12 [1] : vector<16x10xf32> to vector<16xf32>
    %19 = vector.shape_cast %18 : vector<16xf32> to vector<16x1xf32>
    %20 = vector.broadcast %19 : vector<16x1xf32> to vector<16x10xf32>
    %21 = arith.divf %17, %20 : vector<16x10xf32>
    %22 = math.log %21 : vector<16x10xf32>
    %cst_13 = arith.constant 1.000000e+00 : f32
    %23 = vector.broadcast %cst_13 : f32 to vector<16x10xf32>
    %24 = arith.subf %23, %21 : vector<16x10xf32>
    %25 = math.log %24 : vector<16x10xf32>
    %26 = arith.subf %22, %25 : vector<16x10xf32>
    %cst_14 = arith.constant 3.000000e-01 : f32
    %27 = vector.broadcast %cst_14 : f32 to vector<16x10xf32>
    %28 = arith.mulf %26, %27 : vector<16x10xf32>
    %cst_15 = arith.constant 0.000000e+00 : f32
    %29 = vector.broadcast %cst_15 : f32 to vector<16x10xf32>
    %30 = arith.subf %29, %28 : vector<16x10xf32>
    %31 = math.exp %30 : vector<16x10xf32>
    %cst_16 = arith.constant 1.000000e+00 : f32
    %32 = vector.broadcast %cst_16 : f32 to vector<16x10xf32>
    %33 = arith.addf %32, %31 : vector<16x10xf32>
    %cst_17 = arith.constant 1.000000e+00 : f32
    %34 = vector.broadcast %cst_17 : f32 to vector<16x10xf32>
    %35 = arith.divf %34, %33 : vector<16x10xf32>
    %cst_18 = arith.constant 5.000000e-01 : f32
    %36 = vector.broadcast %cst_18 : f32 to vector<16x10xf32>
    %37 = arith.subf %35, %36 : vector<16x10xf32>
    %cst_19 = arith.constant 8.000000e-01 : f32
    %38 = vector.broadcast %cst_19 : f32 to vector<16x10xf32>
    %39 = arith.mulf %37, %38 : vector<16x10xf32>
    %40 = arith.subf %21, %39 : vector<16x10xf32>
    %cst_20 = arith.constant dense<0.000000e+00> : vector<16xf32>
    %41 = vector.multi_reduction <add>, %40, %cst_20 [1] : vector<16x10xf32> to vector<16xf32>
    %42 = vector.shape_cast %41 : vector<16xf32> to vector<16x1xf32>
    %43 = vector.broadcast %42 : vector<16x1xf32> to vector<16x10xf32>
    %44 = arith.divf %40, %43 : vector<16x10xf32>
    %c0_21 = arith.constant 0 : index
    %c0_22 = arith.constant 0 : index
    %45 = vector.load %arg6[%c0_21, %c0_22] : memref<16x10xf32, #tpu.memory_space<vmem>>, vector<16x10xf32>
    tpu.vector_store %arg6[%c0_21, %c0_22], %44 {strides = array<i32>} : memref<16x10xf32, #tpu.memory_space<vmem>>, vector<16x10xf32>,
    return
  }
  func.func @transform_0(%arg0: i32) -> (i32, i32) {
    %c0_i32 = arith.constant 0 : i32
    %c0_i32_0 = arith.constant 0 : i32
    return %arg0, %c0_i32 : i32, i32
  }
  func.func @transform_1(%arg0: i32) -> (i32, i32) {
    %c0_i32 = arith.constant 0 : i32
    %c0_i32_0 = arith.constant 0 : i32
    %c0_i32_1 = arith.constant 0 : i32
    return %c0_i32, %c0_i32_0 : i32, i32
  }
  func.func @transform_2(%arg0: i32) -> (i32, i32) {
    %c0_i32 = arith.constant 0 : i32
    %c0_i32_0 = arith.constant 0 : i32
    %c0_i32_1 = arith.constant 0 : i32
    return %c0_i32, %c0_i32_0 : i32, i32
  }
  func.func @transform_3(%arg0: i32) -> (i32, i32) {
    %c0_i32 = arith.constant 0 : i32
    %c0_i32_0 = arith.constant 0 : i32
    %c0_i32_1 = arith.constant 0 : i32
    return %c0_i32, %c0_i32_0 : i32, i32
  }
  func.func @transform_4(%arg0: i32) -> (i32, i32) {
    %c0_i32 = arith.constant 0 : i32
    %c0_i32_0 = arith.constant 0 : i32
    %c0_i32_1 = arith.constant 0 : i32
    return %c0_i32, %c0_i32_0 : i32, i32
  }
  func.func @transform_5(%arg0: i32) -> (i32, i32) {
    %c0_i32 = arith.constant 0 : i32
    %c0_i32_0 = arith.constant 0 : i32
    return %arg0, %c0_i32 : i32, i32
  }
}

</mosaic_0001>

<llo_original>
// kernel: tpu_custom_call.1
$region0: #{tpu_custom_call.1}
  #allocation0 [shape = 'u32[]', space=smem, size = 0x4, offset = 0x4, fixed_abs, tag = 'smem constant byte address 0x4 - core index']
  #allocation1 [shape = 'u32[144,128]{1,0:T(1,128)}', space=vmem, size = 0x12000, scoped, tag = 'internal scratch']
  %s0 = inlined_call_operand.vmem [shape: bf16[16,1024], index: 0, kind: input, shape index: {}]
  %s1 = inlined_call_operand.vmem [shape: bf16[1024,32], index: 1, kind: input, shape index: {}]
  %s2 = inlined_call_operand.vmem [shape: f32[1,32], index: 2, kind: input, shape index: {}]
  %s3 = inlined_call_operand.vmem [shape: f32[32,10], index: 3, kind: input, shape index: {}]
  %s4 = inlined_call_operand.vmem [shape: f32[1,10], index: 4, kind: input, shape index: {}]
  %s5 = inlined_call_operand.hbm [shape: f32[16,10], index: 5, kind: output, shape index: {}]
  %s6 = sld [smem:[#allocation0]]
  $region30: #{tpu_custom_call.1} parent=0
    _
  %s8 = ssub.s32 1, %s6
  %s9 = scalar_select 0, %s8, %s6
  $region1: #{tpu_custom_call.1} parent=0
    #allocation2 [shape = 'u8[8192]{0}', space=vmem, size = 0x2000, scoped, tag = 'output window, operand 0, single buffered']
    #allocation3 [shape = 's32[1]{0}', space=sflag, size = 0x4, scoped, tag = 'scoped memory for tpu_custom_call.1']
    %10 = vsyncpa [#allocation3], 0
    // Predicated region
    $region2: #{tpu_custom_call.1} parent=1 // pred_check
      _
    $region3: #{tpu_custom_call.1} parent=1 // pred_check_branch
      %12 = sbr.rel (0) target = $region5
    $region4: #{tpu_custom_call.1} parent=1 // pred_region
      _
    $region5: #{tpu_custom_call.1} parent=1 // pred_fallthru
      _
    // Predicated region
    $region6: #{tpu_custom_call.1} parent=1 // pred_check
      _
    $region7: #{tpu_custom_call.1} parent=1 // pred_check_branch
      %14 = sbr.rel (0) target = $region9
    $region8: #{tpu_custom_call.1} parent=1 // pred_region
      _
    $region9: #{tpu_custom_call.1} parent=1 // pred_fallthru
      _
    // Predicated region
    $region10: #{tpu_custom_call.1} parent=1 // pred_check
      _
    $region11: #{tpu_custom_call.1} parent=1 // pred_check_branch
      %16 = sbr.rel (0) target = $region13
    $region12: #{tpu_custom_call.1} parent=1 // pred_region
      _
    $region13: #{tpu_custom_call.1} parent=1 // pred_fallthru
      _
    // Predicated region
    $region14: #{tpu_custom_call.1} parent=1 // pred_check
      _
    $region15: #{tpu_custom_call.1} parent=1 // pred_check_branch
      %18 = sbr.rel (0) target = $region17
    $region16: #{tpu_custom_call.1} parent=1 // pred_region
      _
    $region17: #{tpu_custom_call.1} parent=1 // pred_fallthru
      _
    // Predicated region
    $region18: #{tpu_custom_call.1} parent=1 // pred_check
      _
    $region19: #{tpu_custom_call.1} parent=1 // pred_check_branch
      %20 = sbr.rel (0) target = $region21
    $region20: #{tpu_custom_call.1} parent=1 // pred_region
      _
    $region21: #{tpu_custom_call.1} parent=1 // pred_fallthru
      _
    %v22 = vld [vmem:[%s0] sm:$0xff]
    %v23 = vld [vmem:[%s0 + $0x8] sm:$0xff]
    %v24 = vld [vmem:[%s0 + $0x10] sm:$0xff]
    %v25 = vld [vmem:[%s0 + $0x18] sm:$0xff]
    %v26 = vld [vmem:[%s0 + $0x20] sm:$0xff]
    %v27 = vld [vmem:[%s0 + $0x28] sm:$0xff]
    %v28 = vld [vmem:[%s0 + $0x30] sm:$0xff]
    %v29 = vld [vmem:[%s0 + $0x38] sm:$0xff]
    %v30 = vld [vmem:[%s1] sm:$0xf]
    %v31 = vld [vmem:[%s1 + $0x4] sm:$0xf]
    %v32 = vld [vmem:[%s1 + $0x8] sm:$0xf]
    %v33 = vld [vmem:[%s1 + $0xc] sm:$0xf]
    %v34 = vld [vmem:[%s1 + $0x10] sm:$0xf]
    %v35 = vld [vmem:[%s1 + $0x14] sm:$0xf]
    %v36 = vld [vmem:[%s1 + $0x18] sm:$0xf]
    %v37 = vld [vmem:[%s1 + $0x1c] sm:$0xf]
    %v38 = vld [vmem:[%s1 + $0x20] sm:$0xf]
    %v39 = vld [vmem:[%s1 + $0x24] sm:$0xf]
    %v40 = vld [vmem:[%s1 + $0x28] sm:$0xf]
    %v41 = vld [vmem:[%s1 + $0x2c] sm:$0xf]
    %v42 = vld [vmem:[%s1 + $0x30] sm:$0xf]
    %v43 = vld [vmem:[%s1 + $0x34] sm:$0xf]
    %v44 = vld [vmem:[%s1 + $0x38] sm:$0xf]
    %v45 = vld [vmem:[%s1 + $0x3c] sm:$0xf]
    %v46 = vld [vmem:[%s1 + $0x40] sm:$0xf]
    %v47 = vld [vmem:[%s1 + $0x44] sm:$0xf]
    %v48 = vld [vmem:[%s1 + $0x48] sm:$0xf]
    %v49 = vld [vmem:[%s1 + $0x4c] sm:$0xf]
    %v50 = vld [vmem:[%s1 + $0x50] sm:$0xf]
    %v51 = vld [vmem:[%s1 + $0x54] sm:$0xf]
    %v52 = vld [vmem:[%s1 + $0x58] sm:$0xf]
    %v53 = vld [vmem:[%s1 + $0x5c] sm:$0xf]
    %v54 = vld [vmem:[%s1 + $0x60] sm:$0xf]
    %v55 = vld [vmem:[%s1 + $0x64] sm:$0xf]
    %v56 = vld [vmem:[%s1 + $0x68] sm:$0xf]
    %v57 = vld [vmem:[%s1 + $0x6c] sm:$0xf]
    %v58 = vld [vmem:[%s1 + $0x70] sm:$0xf]
    %v59 = vld [vmem:[%s1 + $0x74] sm:$0xf]
    %v60 = vld [vmem:[%s1 + $0x78] sm:$0xf]
    %v61 = vld [vmem:[%s1 + $0x7c] sm:$0xf]
    %v62 = vld [vmem:[%s1 + $0x80] sm:$0xf]
    %v63 = vld [vmem:[%s1 + $0x84] sm:$0xf]
    %v64 = vld [vmem:[%s1 + $0x88] sm:$0xf]
    %v65 = vld [vmem:[%s1 + $0x8c] sm:$0xf]
    %v66 = vld [vmem:[%s1 + $0x90] sm:$0xf]
    %v67 = vld [vmem:[%s1 + $0x94] sm:$0xf]
    %v68 = vld [vmem:[%s1 + $0x98] sm:$0xf]
    %v69 = vld [vmem:[%s1 + $0x9c] sm:$0xf]
    %v70 = vld [vmem:[%s1 + $0xa0] sm:$0xf]
    %v71 = vld [vmem:[%s1 + $0xa4] sm:$0xf]
    %v72 = vld [vmem:[%s1 + $0xa8] sm:$0xf]
    %v73 = vld [vmem:[%s1 + $0xac] sm:$0xf]
    %v74 = vld [vmem:[%s1 + $0xb0] sm:$0xf]
    %v75 = vld [vmem:[%s1 + $0xb4] sm:$0xf]
    %v76 = vld [vmem:[%s1 + $0xb8] sm:$0xf]
    %v77 = vld [vmem:[%s1 + $0xbc] sm:$0xf]
    %v78 = vld [vmem:[%s1 + $0xc0] sm:$0xf]
    %v79 = vld [vmem:[%s1 + $0xc4] sm:$0xf]
    %v80 = vld [vmem:[%s1 + $0xc8] sm:$0xf]
    %v81 = vld [vmem:[%s1 + $0xcc] sm:$0xf]
    %v82 = vld [vmem:[%s1 + $0xd0] sm:$0xf]
    %v83 = vld [vmem:[%s1 + $0xd4] sm:$0xf]
    %v84 = vld [vmem:[%s1 + $0xd8] sm:$0xf]
    %v85 = vld [vmem:[%s1 + $0xdc] sm:$0xf]
    %v86 = vld [vmem:[%s1 + $0xe0] sm:$0xf]
    %v87 = vld [vmem:[%s1 + $0xe4] sm:$0xf]
    %v88 = vld [vmem:[%s1 + $0xe8] sm:$0xf]
    %v89 = vld [vmem:[%s1 + $0xec] sm:$0xf]
    %v90 = vld [vmem:[%s1 + $0xf0] sm:$0xf]
    %v91 = vld [vmem:[%s1 + $0xf4] sm:$0xf]
    %v92 = vld [vmem:[%s1 + $0xf8] sm:$0xf]
    %v93 = vld [vmem:[%s1 + $0xfc] sm:$0xf]
    %v94 = vld [vmem:[%s1 + $0x100] sm:$0xf]
    %v95 = vld [vmem:[%s1 + $0x104] sm:$0xf]
    %v96 = vld [vmem:[%s1 + $0x108] sm:$0xf]
    %v97 = vld [vmem:[%s1 + $0x10c] sm:$0xf]
    %v98 = vld [vmem:[%s1 + $0x110] sm:$0xf]
    %v99 = vld [vmem:[%s1 + $0x114] sm:$0xf]
    %v100 = vld [vmem:[%s1 + $0x118] sm:$0xf]
    %v101 = vld [vmem:[%s1 + $0x11c] sm:$0xf]
    %v102 = vld [vmem:[%s1 + $0x120] sm:$0xf]
    %v103 = vld [vmem:[%s1 + $0x124] sm:$0xf]
    %v104 = vld [vmem:[%s1 + $0x128] sm:$0xf]
    %v105 = vld [vmem:[%s1 + $0x12c] sm:$0xf]
    %v106 = vld [vmem:[%s1 + $0x130] sm:$0xf]
    %v107 = vld [vmem:[%s1 + $0x134] sm:$0xf]
    %v108 = vld [vmem:[%s1 + $0x138] sm:$0xf]
    %v109 = vld [vmem:[%s1 + $0x13c] sm:$0xf]
    %v110 = vld [vmem:[%s1 + $0x140] sm:$0xf]
    %v111 = vld [vmem:[%s1 + $0x144] sm:$0xf]
    %v112 = vld [vmem:[%s1 + $0x148] sm:$0xf]
    %v113 = vld [vmem:[%s1 + $0x14c] sm:$0xf]
    %v114 = vld [vmem:[%s1 + $0x150] sm:$0xf]
    %v115 = vld [vmem:[%s1 + $0x154] sm:$0xf]
    %v116 = vld [vmem:[%s1 + $0x158] sm:$0xf]
    %v117 = vld [vmem:[%s1 + $0x15c] sm:$0xf]
    %v118 = vld [vmem:[%s1 + $0x160] sm:$0xf]
    %v119 = vld [vmem:[%s1 + $0x164] sm:$0xf]
    %v120 = vld [vmem:[%s1 + $0x168] sm:$0xf]
    %v121 = vld [vmem:[%s1 + $0x16c] sm:$0xf]
    %v122 = vld [vmem:[%s1 + $0x170] sm:$0xf]
    %v123 = vld [vmem:[%s1 + $0x174] sm:$0xf]
    %v124 = vld [vmem:[%s1 + $0x178] sm:$0xf]
    %v125 = vld [vmem:[%s1 + $0x17c] sm:$0xf]
    %v126 = vld [vmem:[%s1 + $0x180] sm:$0xf]
    %v127 = vld [vmem:[%s1 + $0x184] sm:$0xf]
    %v128 = vld [vmem:[%s1 + $0x188] sm:$0xf]
    %v129 = vld [vmem:[%s1 + $0x18c] sm:$0xf]
    %v130 = vld [vmem:[%s1 + $0x190] sm:$0xf]
    %v131 = vld [vmem:[%s1 + $0x194] sm:$0xf]
    %v132 = vld [vmem:[%s1 + $0x198] sm:$0xf]
    %v133 = vld [vmem:[%s1 + $0x19c] sm:$0xf]
    %v134 = vld [vmem:[%s1 + $0x1a0] sm:$0xf]
    %v135 = vld [vmem:[%s1 + $0x1a4] sm:$0xf]
    %v136 = vld [vmem:[%s1 + $0x1a8] sm:$0xf]
    %v137 = vld [vmem:[%s1 + $0x1ac] sm:$0xf]
    %v138 = vld [vmem:[%s1 + $0x1b0] sm:$0xf]
    %v139 = vld [vmem:[%s1 + $0x1b4] sm:$0xf]
    %v140 = vld [vmem:[%s1 + $0x1b8] sm:$0xf]
    %v141 = vld [vmem:[%s1 + $0x1bc] sm:$0xf]
    %v142 = vld [vmem:[%s1 + $0x1c0] sm:$0xf]
    %v143 = vld [vmem:[%s1 + $0x1c4] sm:$0xf]
    %v144 = vld [vmem:[%s1 + $0x1c8] sm:$0xf]
    %v145 = vld [vmem:[%s1 + $0x1cc] sm:$0xf]
    %v146 = vld [vmem:[%s1 + $0x1d0] sm:$0xf]
    %v147 = vld [vmem:[%s1 + $0x1d4] sm:$0xf]
    %v148 = vld [vmem:[%s1 + $0x1d8] sm:$0xf]
    %v149 = vld [vmem:[%s1 + $0x1dc] sm:$0xf]
    %v150 = vld [vmem:[%s1 + $0x1e0] sm:$0xf]
    %v151 = vld [vmem:[%s1 + $0x1e4] sm:$0xf]
    %v152 = vld [vmem:[%s1 + $0x1e8] sm:$0xf]
    %v153 = vld [vmem:[%s1 + $0x1ec] sm:$0xf]
    %v154 = vld [vmem:[%s1 + $0x1f0] sm:$0xf]
    %v155 = vld [vmem:[%s1 + $0x1f4] sm:$0xf]
    %v156 = vld [vmem:[%s1 + $0x1f8] sm:$0xf]
    %v157 = vld [vmem:[%s1 + $0x1fc] sm:$0xf]
    %v158 = vld [vmem:[%s2] sm:$0x1]
    %v160 = vlaneseq
    %v161 = vshrl.u32 %v160, 7
    %v162 = vsub.s32 0, %v161
    %v163 = vrot.slane %v158, %v162
    %v173 = vunpack.c.l.b16 %v22
    %v174 = vunpack.c.h.b16 %v22
    %v175 = vunpack.c.l.b16 %v23
    %v176 = vunpack.c.h.b16 %v23
    %v177 = vunpack.c.l.b16 %v24
    %v178 = vunpack.c.h.b16 %v24
    %v179 = vunpack.c.l.b16 %v25
    %v180 = vunpack.c.h.b16 %v25
    %v181 = vunpack.c.l.b16 %v26
    %v182 = vunpack.c.h.b16 %v26
    %v183 = vunpack.c.l.b16 %v27
    %v184 = vunpack.c.h.b16 %v27
    %v185 = vunpack.c.l.b16 %v28
    %v186 = vunpack.c.h.b16 %v28
    %v187 = vunpack.c.l.b16 %v29
    %v188 = vunpack.c.h.b16 %v29
    %v189 = vpack.c.b16 %v181, %v173
    %v190 = vpack.c.b16 %v182, %v174
    %v191 = vpack.c.b16 %v183, %v175
    %v192 = vpack.c.b16 %v184, %v176
    %v193 = vpack.c.b16 %v185, %v177
    %v194 = vpack.c.b16 %v186, %v178
    %v195 = vpack.c.b16 %v187, %v179
    %v196 = vpack.c.b16 %v188, %v180
    %v333 = vunpack.c.l.b16 %v30
    %v334 = vunpack.c.l.b16 %v31
    %v335 = vunpack.c.l.b16 %v32
    %v336 = vunpack.c.l.b16 %v33
    %v337 = vunpack.c.l.b16 %v34
    %v338 = vunpack.c.l.b16 %v35
    %v339 = vunpack.c.l.b16 %v36
    %v340 = vunpack.c.l.b16 %v37
    %v341 = vunpack.c.l.b16 %v38
    %v342 = vunpack.c.l.b16 %v39
    %v343 = vunpack.c.l.b16 %v40
    %v344 = vunpack.c.l.b16 %v41
    %v345 = vunpack.c.l.b16 %v42
    %v346 = vunpack.c.l.b16 %v43
    %v347 = vunpack.c.l.b16 %v44
    %v348 = vunpack.c.l.b16 %v45
    %v349 = vunpack.c.l.b16 %v46
    %v350 = vunpack.c.l.b16 %v47
    %v351 = vunpack.c.l.b16 %v48
    %v352 = vunpack.c.l.b16 %v49
    %v353 = vunpack.c.l.b16 %v50
    %v354 = vunpack.c.l.b16 %v51
    %v355 = vunpack.c.l.b16 %v52
    %v356 = vunpack.c.l.b16 %v53
    %v357 = vunpack.c.l.b16 %v54
    %v358 = vunpack.c.l.b16 %v55
    %v359 = vunpack.c.l.b16 %v56
    %v360 = vunpack.c.l.b16 %v57
    %v361 = vunpack.c.l.b16 %v58
    %v362 = vunpack.c.l.b16 %v59
    %v363 = vunpack.c.l.b16 %v60
    %v364 = vunpack.c.l.b16 %v61
    %v365 = vunpack.c.l.b16 %v62
    %v366 = vunpack.c.l.b16 %v63
    %v367 = vunpack.c.l.b16 %v64
    %v368 = vunpack.c.l.b16 %v65
    %v369 = vunpack.c.l.b16 %v66
    %v370 = vunpack.c.l.b16 %v67
    %v371 = vunpack.c.l.b16 %v68
    %v372 = vunpack.c.l.b16 %v69
    %v373 = vunpack.c.l.b16 %v70
    %v374 = vunpack.c.l.b16 %v71
    %v375 = vunpack.c.l.b16 %v72
    %v376 = vunpack.c.l.b16 %v73
    %v377 = vunpack.c.l.b16 %v74
    %v378 = vunpack.c.l.b16 %v75
    %v379 = vunpack.c.l.b16 %v76
    %v380 = vunpack.c.l.b16 %v77
    %v381 = vunpack.c.l.b16 %v78
    %v382 = vunpack.c.l.b16 %v79
    %v383 = vunpack.c.l.b16 %v80
    %v384 = vunpack.c.l.b16 %v81
    %v385 = vunpack.c.l.b16 %v82
    %v386 = vunpack.c.l.b16 %v83
    %v387 = vunpack.c.l.b16 %v84
    %v388 = vunpack.c.l.b16 %v85
    %v389 = vunpack.c.l.b16 %v86
    %v390 = vunpack.c.l.b16 %v87
    %v391 = vunpack.c.l.b16 %v88
    %v392 = vunpack.c.l.b16 %v89
    %v393 = vunpack.c.l.b16 %v90
    %v394 = vunpack.c.l.b16 %v91
    %v395 = vunpack.c.l.b16 %v92
    %v396 = vunpack.c.l.b16 %v93
    %v397 = vunpack.c.l.b16 %v94
    %v398 = vunpack.c.l.b16 %v95
    %v399 = vunpack.c.l.b16 %v96
    %v400 = vunpack.c.l.b16 %v97
    %v401 = vunpack.c.l.b16 %v98
    %v402 = vunpack.c.l.b16 %v99
    %v403 = vunpack.c.l.b16 %v100
    %v404 = vunpack.c.l.b16 %v101
    %v405 = vunpack.c.l.b16 %v102
    %v406 = vunpack.c.l.b16 %v103
    %v407 = vunpack.c.l.b16 %v104
    %v408 = vunpack.c.l.b16 %v105
    %v409 = vunpack.c.l.b16 %v106
    %v410 = vunpack.c.l.b16 %v107
    %v411 = vunpack.c.l.b16 %v108
    %v412 = vunpack.c.l.b16 %v109
    %v413 = vunpack.c.l.b16 %v110
    %v414 = vunpack.c.l.b16 %v111
    %v415 = vunpack.c.l.b16 %v112
    %v416 = vunpack.c.l.b16 %v113
    %v417 = vunpack.c.l.b16 %v114
    %v418 = vunpack.c.l.b16 %v115
    %v419 = vunpack.c.l.b16 %v116
    %v420 = vunpack.c.l.b16 %v117
    %v421 = vunpack.c.l.b16 %v118
    %v422 = vunpack.c.l.b16 %v119
    %v423 = vunpack.c.l.b16 %v120
    %v424 = vunpack.c.l.b16 %v121
    %v425 = vunpack.c.l.b16 %v122
    %v426 = vunpack.c.l.b16 %v123
    %v427 = vunpack.c.l.b16 %v124
    %v428 = vunpack.c.l.b16 %v125
    %v429 = vunpack.c.l.b16 %v126
    %v430 = vunpack.c.l.b16 %v127
    %v431 = vunpack.c.l.b16 %v128
    %v432 = vunpack.c.l.b16 %v129
    %v433 = vunpack.c.l.b16 %v130
    %v434 = vunpack.c.l.b16 %v131
    %v435 = vunpack.c.l.b16 %v132
    %v436 = vunpack.c.l.b16 %v133
    %v437 = vunpack.c.l.b16 %v134
    %v438 = vunpack.c.l.b16 %v135
    %v439 = vunpack.c.l.b16 %v136
    %v440 = vunpack.c.l.b16 %v137
    %v441 = vunpack.c.l.b16 %v138
    %v442 = vunpack.c.l.b16 %v139
    %v443 = vunpack.c.l.b16 %v140
    %v444 = vunpack.c.l.b16 %v141
    %v445 = vunpack.c.l.b16 %v142
    %v446 = vunpack.c.l.b16 %v143
    %v447 = vunpack.c.l.b16 %v144
    %v448 = vunpack.c.l.b16 %v145
    %v449 = vunpack.c.l.b16 %v146
    %v450 = vunpack.c.l.b16 %v147
    %v451 = vunpack.c.l.b16 %v148
    %v452 = vunpack.c.l.b16 %v149
    %v453 = vunpack.c.l.b16 %v150
    %v454 = vunpack.c.l.b16 %v151
    %v455 = vunpack.c.l.b16 %v152
    %v456 = vunpack.c.l.b16 %v153
    %v457 = vunpack.c.l.b16 %v154
    %v458 = vunpack.c.l.b16 %v155
    %v459 = vunpack.c.l.b16 %v156
    %v460 = vunpack.c.l.b16 %v157
    %v461 = vpack.c.b16 %v334, %v333
    %v462 = vpack.c.b16 %v336, %v335
    %v463 = vpack.c.b16 %v338, %v337
    %v464 = vpack.c.b16 %v340, %v339
    %v465 = vpack.c.b16 %v342, %v341
    %v466 = vpack.c.b16 %v344, %v343
    %v467 = vpack.c.b16 %v346, %v345
    %v468 = vpack.c.b16 %v348, %v347
    %v469 = vpack.c.b16 %v350, %v349
    %v470 = vpack.c.b16 %v352, %v351
    %v471 = vpack.c.b16 %v354, %v353
    %v472 = vpack.c.b16 %v356, %v355
    %v473 = vpack.c.b16 %v358, %v357
    %v474 = vpack.c.b16 %v360, %v359
    %v475 = vpack.c.b16 %v362, %v361
    %v476 = vpack.c.b16 %v364, %v363
    %v477 = vpack.c.b16 %v366, %v365
    %v478 = vpack.c.b16 %v368, %v367
    %v479 = vpack.c.b16 %v370, %v369
    %v480 = vpack.c.b16 %v372, %v371
    %v481 = vpack.c.b16 %v374, %v373
    %v482 = vpack.c.b16 %v376, %v375
    %v483 = vpack.c.b16 %v378, %v377
    %v484 = vpack.c.b16 %v380, %v379
    %v485 = vpack.c.b16 %v382, %v381
    %v486 = vpack.c.b16 %v384, %v383
    %v487 = vpack.c.b16 %v386, %v385
    %v488 = vpack.c.b16 %v388, %v387
    %v489 = vpack.c.b16 %v390, %v389
    %v490 = vpack.c.b16 %v392, %v391
    %v491 = vpack.c.b16 %v394, %v393
    %v492 = vpack.c.b16 %v396, %v395
    %v493 = vpack.c.b16 %v398, %v397
    %v494 = vpack.c.b16 %v400, %v399
    %v495 = vpack.c.b16 %v402, %v401
    %v496 = vpack.c.b16 %v404, %v403
    %v497 = vpack.c.b16 %v406, %v405
    %v498 = vpack.c.b16 %v408, %v407
    %v499 = vpack.c.b16 %v410, %v409
    %v500 = vpack.c.b16 %v412, %v411
    %v501 = vpack.c.b16 %v414, %v413
    %v502 = vpack.c.b16 %v416, %v415
    %v503 = vpack.c.b16 %v418, %v417
    %v504 = vpack.c.b16 %v420, %v419
    %v505 = vpack.c.b16 %v422, %v421
    %v506 = vpack.c.b16 %v424, %v423
    %v507 = vpack.c.b16 %v426, %v425
    %v508 = vpack.c.b16 %v428, %v427
    %v509 = vpack.c.b16 %v430, %v429
    %v510 = vpack.c.b16 %v432, %v431
    %v511 = vpack.c.b16 %v434, %v433
    %v512 = vpack.c.b16 %v436, %v435
    %v513 = vpack.c.b16 %v438, %v437
    %v514 = vpack.c.b16 %v440, %v439
    %v515 = vpack.c.b16 %v442, %v441
    %v516 = vpack.c.b16 %v444, %v443
    %v517 = vpack.c.b16 %v446, %v445
    %v518 = vpack.c.b16 %v448, %v447
    %v519 = vpack.c.b16 %v450, %v449
    %v520 = vpack.c.b16 %v452, %v451
    %v521 = vpack.c.b16 %v454, %v453
    %v522 = vpack.c.b16 %v456, %v455
    %v523 = vpack.c.b16 %v458, %v457
    %v524 = vpack.c.b16 %v460, %v459
    %589 = vmatprep.subr.bf16.mxu0 0
    %590 = vmatpush1.bf16.msra.mxu0 %v468
    %591 = vmatprep.subr.bf16.mxu0 0
    %592 = vmatpush1.bf16.msra.mxu0 %v467
    %593 = vmatprep.subr.bf16.mxu0 0
    %594 = vmatpush1.bf16.msra.mxu0 %v466
    %595 = vmatprep.subr.bf16.mxu0 0
    %596 = vmatpush1.bf16.msra.mxu0 %v465
    %597 = vmatprep.subr.bf16.mxu0 0
    %598 = vmatpush1.bf16.msra.mxu0 %v464
    %599 = vmatprep.subr.bf16.mxu0 0
    %600 = vmatpush1.bf16.msra.mxu0 %v463
    %601 = vmatprep.subr.bf16.mxu0 0
    %602 = vmatpush1.bf16.msra.mxu0 %v462
    %603 = vmatprep.subr.bf16.mxu0 0
    %604 = vmatpush1.bf16.msra.mxu0 %v461
    %605 = vmatprep.subr.bf16.mxu0 0
    %606 = vmatpush2.bf16.msra.mxu0 %v476
    %607 = vmatprep.subr.bf16.mxu0 0
    %608 = vmatpush2.bf16.msra.mxu0 %v475
    %609 = vmatprep.subr.bf16.mxu0 0
    %610 = vmatpush2.bf16.msra.mxu0 %v474
    %611 = vmatprep.subr.bf16.mxu0 0
    %612 = vmatpush2.bf16.msra.mxu0 %v473
    %613 = vmatprep.subr.bf16.mxu0 0
    %614 = vmatpush2.bf16.msra.mxu0 %v472
    %615 = vmatprep.subr.bf16.mxu0 0
    %616 = vmatpush2.bf16.msra.mxu0 %v471
    %617 = vmatprep.subr.bf16.mxu0 0
    %618 = vmatpush2.bf16.msra.mxu0 %v470
    %619 = vmatprep.subr.bf16.mxu0 0
    %620 = vmatpush2.bf16.msra.mxu0 %v469
    %621 = vmatprep.mubr.bf16.mxu0 %v190
    %622 = vmatmul.mubr.bf16.gmra.mxu0 %v189
    %v623 = vpop.f32.mrf.mxu0
    %v624 = vadd.f32 %v163, %v623
    %v625 = vpop.f32.mrf.mxu0
    %v626 = vpop.f32.mrf.mxu0
    %v627 = vadd.f32 %v163, %v626
    %v628 = vpop.f32.mrf.mxu0
    %629 = vdwg.mxu0
    %630 = vmatprep.subr.bf16.mxu0 0
    %631 = vmatpush1.bf16.msra.mxu0 %v484
    %632 = vmatprep.subr.bf16.mxu0 0
    %633 = vmatpush1.bf16.msra.mxu0 %v483
    %634 = vmatprep.subr.bf16.mxu0 0
    %635 = vmatpush1.bf16.msra.mxu0 %v482
    %636 = vmatprep.subr.bf16.mxu0 0
    %637 = vmatpush1.bf16.msra.mxu0 %v481
    %638 = vmatprep.subr.bf16.mxu0 0
    %639 = vmatpush1.bf16.msra.mxu0 %v480
    %640 = vmatprep.subr.bf16.mxu0 0
    %641 = vmatpush1.bf16.msra.mxu0 %v479
    %642 = vmatprep.subr.bf16.mxu0 0
    %643 = vmatpush1.bf16.msra.mxu0 %v478
    %644 = vmatprep.subr.bf16.mxu0 0
    %645 = vmatpush1.bf16.msra.mxu0 %v477
    %646 = vmatprep.subr.bf16.mxu0 0
    %647 = vmatpush2.bf16.msra.mxu0 %v492
    %648 = vmatprep.subr.bf16.mxu0 0
    %649 = vmatpush2.bf16.msra.mxu0 %v491
    %650 = vmatprep.subr.bf16.mxu0 0
    %651 = vmatpush2.bf16.msra.mxu0 %v490
    %652 = vmatprep.subr.bf16.mxu0 0
    %653 = vmatpush2.bf16.msra.mxu0 %v489
    %654 = vmatprep.subr.bf16.mxu0 0
    %655 = vmatpush2.bf16.msra.mxu0 %v488
    %656 = vmatprep.subr.bf16.mxu0 0
    %657 = vmatpush2.bf16.msra.mxu0 %v487
    %658 = vmatprep.subr.bf16.mxu0 0
    %659 = vmatpush2.bf16.msra.mxu0 %v486
    %660 = vmatprep.subr.bf16.mxu0 0
    %661 = vmatpush2.bf16.msra.mxu0 %v485
    %662 = vmatprep.mubr.bf16.mxu0 %v192
    %663 = vmatmul.mubr.bf16.gmra.mxu0 %v191
    %v664 = vpop.f32.mrf.mxu0
    %v665 = vadd.f32 %v624, %v664
    %v666 = vpop.f32.mrf.mxu0
    %v667 = vpop.f32.mrf.mxu0
    %v668 = vadd.f32 %v627, %v667
    %v669 = vpop.f32.mrf.mxu0
    %670 = vdwg.mxu0
    %671 = vmatprep.subr.bf16.mxu0 0
    %672 = vmatpush1.bf16.msra.mxu0 %v500
    %673 = vmatprep.subr.bf16.mxu0 0
    %674 = vmatpush1.bf16.msra.mxu0 %v499
    %675 = vmatprep.subr.bf16.mxu0 0
    %676 = vmatpush1.bf16.msra.mxu0 %v498
    %677 = vmatprep.subr.bf16.mxu0 0
    %678 = vmatpush1.bf16.msra.mxu0 %v497
    %679 = vmatprep.subr.bf16.mxu0 0
    %680 = vmatpush1.bf16.msra.mxu0 %v496
    %681 = vmatprep.subr.bf16.mxu0 0
    %682 = vmatpush1.bf16.msra.mxu0 %v495
    %683 = vmatprep.subr.bf16.mxu0 0
    %684 = vmatpush1.bf16.msra.mxu0 %v494
    %685 = vmatprep.subr.bf16.mxu0 0
    %686 = vmatpush1.bf16.msra.mxu0 %v493
    %687 = vmatprep.subr.bf16.mxu0 0
    %688 = vmatpush2.bf16.msra.mxu0 %v508
    %689 = vmatprep.subr.bf16.mxu0 0
    %690 = vmatpush2.bf16.msra.mxu0 %v507
    %691 = vmatprep.subr.bf16.mxu0 0
    %692 = vmatpush2.bf16.msra.mxu0 %v506
    %693 = vmatprep.subr.bf16.mxu0 0
    %694 = vmatpush2.bf16.msra.mxu0 %v505
    %695 = vmatprep.subr.bf16.mxu0 0
    %696 = vmatpush2.bf16.msra.mxu0 %v504
    %697 = vmatprep.subr.bf16.mxu0 0
    %698 = vmatpush2.bf16.msra.mxu0 %v503
    %699 = vmatprep.subr.bf16.mxu0 0
    %700 = vmatpush2.bf16.msra.mxu0 %v502
    %701 = vmatprep.subr.bf16.mxu0 0
    %702 = vmatpush2.bf16.msra.mxu0 %v501
    %703 = vmatprep.mubr.bf16.mxu0 %v194
    %704 = vmatmul.mubr.bf16.gmra.mxu0 %v193
    %v705 = vpop.f32.mrf.mxu0
    %v706 = vadd.f32 %v665, %v705
    %v707 = vpop.f32.mrf.mxu0
    %v708 = vpop.f32.mrf.mxu0
    %v709 = vadd.f32 %v668, %v708
    %v710 = vpop.f32.mrf.mxu0
    %711 = vdwg.mxu0
    %712 = vmatprep.subr.bf16.mxu0 0
    %713 = vmatpush1.bf16.msra.mxu0 %v516
    %714 = vmatprep.subr.bf16.mxu0 0
    %715 = vmatpush1.bf16.msra.mxu0 %v515
    %716 = vmatprep.subr.bf16.mxu0 0
    %717 = vmatpush1.bf16.msra.mxu0 %v514
    %718 = vmatprep.subr.bf16.mxu0 0
    %719 = vmatpush1.bf16.msra.mxu0 %v513
    %720 = vmatprep.subr.bf16.mxu0 0
    %721 = vmatpush1.bf16.msra.mxu0 %v512
    %722 = vmatprep.subr.bf16.mxu0 0
    %723 = vmatpush1.bf16.msra.mxu0 %v511
    %724 = vmatprep.subr.bf16.mxu0 0
    %725 = vmatpush1.bf16.msra.mxu0 %v510
    %726 = vmatprep.subr.bf16.mxu0 0
    %727 = vmatpush1.bf16.msra.mxu0 %v509
    %728 = vmatprep.subr.bf16.mxu0 0
    %729 = vmatpush2.bf16.msra.mxu0 %v524
    %730 = vmatprep.subr.bf16.mxu0 0
    %731 = vmatpush2.bf16.msra.mxu0 %v523
    %732 = vmatprep.subr.bf16.mxu0 0
    %733 = vmatpush2.bf16.msra.mxu0 %v522
    %734 = vmatprep.subr.bf16.mxu0 0
    %735 = vmatpush2.bf16.msra.mxu0 %v521
    %736 = vmatprep.subr.bf16.mxu0 0
    %737 = vmatpush2.bf16.msra.mxu0 %v520
    %738 = vmatprep.subr.bf16.mxu0 0
    %739 = vmatpush2.bf16.msra.mxu0 %v519
    %740 = vmatprep.subr.bf16.mxu0 0
    %741 = vmatpush2.bf16.msra.mxu0 %v518
    %742 = vmatprep.subr.bf16.mxu0 0
    %743 = vmatpush2.bf16.msra.mxu0 %v517
    %744 = vmatprep.mubr.bf16.mxu0 %v196
    %745 = vmatmul.mubr.bf16.gmra.mxu0 %v195
    %v746 = vpop.f32.mrf.mxu0
    %v747 = vadd.f32 %v706, %v746
    %v748 = vpop.f32.mrf.mxu0
    %v749 = vpop.f32.mrf.mxu0
    %v750 = vadd.f32 %v709, %v749
    %v751 = vpop.f32.mrf.mxu0
    %752 = vdwg.mxu0
    %v753 = vmax.f32 %v747, 0.0
    %v754 = vmax.f32 %v750, 0.0
    %v755 = vld [vmem:[%s3] sm:$0xff]
    %v756 = vld [vmem:[%s3 + $0x8] sm:$0xff]
    %v757 = vld [vmem:[%s3 + $0x10] sm:$0xff]
    %v758 = vld [vmem:[%s3 + $0x18] sm:$0xff]
    %v759 = vld [vmem:[%s4] sm:$0x1]
    %v761 = vlaneseq
    %v762 = vshrl.u32 %v761, 7
    %v763 = vsub.s32 0, %v762
    %v764 = vrot.slane %v759, %v763
    %vm766 = vcmask 261120
    %v768 = vsel %vm766, %v753, 0
    %v771 = vsel %vm766, %v754, 0
    %773 = vmatprep.subr.mxu0 0.0
    %774 = vmatpush1.msra.mxu0 0.0
    %775 = vmatprep.subr.mxu0 0.0
    %776 = vmatpush1.msra.mxu0 0.0
    %777 = vmatprep.subr.mxu0 0.0
    %778 = vmatpush1.msra.mxu0 0.0
    %779 = vmatprep.subr.mxu0 0.0
    %780 = vmatpush1.msra.mxu0 0.0
    %781 = vmatprep.subr.mxu0 0.0
    %782 = vmatpush1.msra.mxu0 0.0
    %783 = vmatprep.subr.mxu0 0.0
    %784 = vmatpush1.msra.mxu0 0.0
    %785 = vmatprep.subr.mxu0 0.0
    %786 = vmatpush1.msra.mxu0 0.0
    %787 = vmatprep.subr.mxu0 0.0
    %788 = vmatpush1.msra.mxu0 0.0
    %789 = vmatprep.subr.mxu0 0.0
    %790 = vmatpush1.msra.mxu0 0.0
    %791 = vmatprep.subr.mxu0 0.0
    %792 = vmatpush1.msra.mxu0 0.0
    %793 = vmatprep.subr.mxu0 0.0
    %794 = vmatpush1.msra.mxu0 0.0
    %795 = vmatprep.subr.mxu0 0.0
    %796 = vmatpush1.msra.mxu0 0.0
    %797 = vmatprep.subr.mxu0 0.0
    %798 = vmatpush1.msra.mxu0 %v758
    %799 = vmatprep.subr.mxu0 0.0
    %800 = vmatpush1.msra.mxu0 %v757
    %801 = vmatprep.subr.mxu0 0.0
    %802 = vmatpush1.msra.mxu0 %v756
    %803 = vmatprep.subr.mxu0 0.0
    %804 = vmatpush1.msra.mxu0 %v755
    %805 = vmatprep.subr.mxu0 0.0
    %806 = vmatpush2.msra.mxu0 0.0
    %807 = vmatprep.subr.mxu0 0.0
    %808 = vmatpush2.msra.mxu0 0.0
    %809 = vmatprep.subr.mxu0 0.0
    %810 = vmatpush2.msra.mxu0 0.0
    %811 = vmatprep.subr.mxu0 0.0
    %812 = vmatpush2.msra.mxu0 0.0
    %813 = vmatprep.subr.mxu0 0.0
    %814 = vmatpush2.msra.mxu0 0.0
    %815 = vmatprep.subr.mxu0 0.0
    %816 = vmatpush2.msra.mxu0 0.0
    %817 = vmatprep.subr.mxu0 0.0
    %818 = vmatpush2.msra.mxu0 0.0
    %819 = vmatprep.subr.mxu0 0.0
    %820 = vmatpush2.msra.mxu0 0.0
    %821 = vmatprep.subr.mxu0 0.0
    %822 = vmatpush2.msra.mxu0 0.0
    %823 = vmatprep.subr.mxu0 0.0
    %824 = vmatpush2.msra.mxu0 0.0
    %825 = vmatprep.subr.mxu0 0.0
    %826 = vmatpush2.msra.mxu0 0.0
    %827 = vmatprep.subr.mxu0 0.0
    %828 = vmatpush2.msra.mxu0 0.0
    %829 = vmatprep.subr.mxu0 0.0
    %830 = vmatpush2.msra.mxu0 0.0
    %831 = vmatprep.subr.mxu0 0.0
    %832 = vmatpush2.msra.mxu0 0.0
    %833 = vmatprep.subr.mxu0 0.0
    %834 = vmatpush2.msra.mxu0 0.0
    %835 = vmatprep.subr.mxu0 0.0
    %836 = vmatpush2.msra.mxu0 0.0
    %837 = vmatprep.mubr.f32.mxu0 0.0
    %838 = vmatmul.mubr.f32.gmra.mxu0 %v768
    %v839 = vpop.f32.mrf.mxu0
    %v840 = vadd.f32 %v764, %v839
    %v841 = vpop.f32.mrf.mxu0
    %842 = vmatprep.mubr.f32.mxu0 0.0
    %843 = vmatmul.mubr.f32.gmra.mxu0 %v771
    %v844 = vpop.f32.mrf.mxu0
    %v845 = vadd.f32 %v764, %v844
    %v846 = vpop.f32.mrf.mxu0
    %847 = vdwg.mxu0
    %vm848 = vcmask 80896
    %v849 = vsel %vm848, %v840, -inf
    %850 = vmax.xlane.f32.xlu0 %v849
    %v851 = vpop.xlane.xlu0 %850
    %v852 = vsel %vm848, %v845, -inf
    %853 = vmax.xlane.f32.xlu0 %v852
    %v854 = vpop.xlane.xlu0 %853
    %v855 = vsub.f32 %v840, %v851
    %v856 = vsub.f32 %v845, %v854
    %v857 = vmul.f32 %v855, 1.442695
    %v858 = vpow.pop %v857
    %v859 = vmul.f32 %v856, 1.442695
    %v860 = vpow.pop %v859
    %v861 = vsel %vm848, %v858, 0.0
    %862 = vadd.xlane.f32.xlu0 %v861
    %v863 = vpop.xlane.xlu0 %862
    %v864 = vsel %vm848, %v860, 0.0
    %865 = vadd.xlane.f32.xlu0 %v864
    %v866 = vpop.xlane.xlu0 %865
    %v867 = vrcp.pop %v863
    %v868 = vmul.f32 %v858, %v867
    %v869 = vrcp.pop %v866
    %v870 = vmul.f32 %v860, %v869
    %v871 = vlog2.pop %v868
    %v872 = vmul.f32 %v871, 0.6931472
    %v873 = vlog2.pop %v870
    %v874 = vmul.f32 %v873, 0.6931472
    %v875 = vsub.f32 1.0, %v868
    %v876 = vsub.f32 1.0, %v870
    %v877 = vlog2.pop %v875
    %v878 = vmul.f32 %v877, 0.6931472
    %v879 = vlog2.pop %v876
    %v880 = vmul.f32 %v879, 0.6931472
    %v881 = vsub.f32 %v872, %v878
    %v882 = vsub.f32 %v874, %v880
    %v883 = vmul.f32 %v881, 0.3
    %v884 = vmul.f32 %v882, 0.3
    %v885 = vsub.f32 0.0, %v883
    %v886 = vsub.f32 0.0, %v884
    %v887 = vmul.f32 %v885, 1.442695
    %v888 = vpow.pop %v887
    %v889 = vmul.f32 %v886, 1.442695
    %v890 = vpow.pop %v889
    %v891 = vadd.f32 %v888, 1.0
    %v892 = vadd.f32 %v890, 1.0
    %v893 = vrcp.pop %v891
    %v894 = vmul.f32 1.0, %v893
    %v895 = vrcp.pop %v892
    %v896 = vmul.f32 1.0, %v895
    %v897 = vsub.f32 %v894, 0.5
    %v898 = vsub.f32 %v896, 0.5
    %v899 = vmul.f32 %v897, 0.8
    %v900 = vmul.f32 %v898, 0.8
    %v901 = vsub.f32 %v868, %v899
    %v902 = vsub.f32 %v870, %v900
    %v903 = vsel %vm848, %v901, 0.0
    %904 = vadd.xlane.f32.xlu0 %v903
    %v905 = vpop.xlane.xlu0 %904
    %v906 = vsel %vm848, %v902, 0.0
    %907 = vadd.xlane.f32.xlu0 %v906
    %v908 = vpop.xlane.xlu0 %907
    %v909 = vrcp.pop %v905
    %v910 = vmul.f32 %v901, %v909
    %v911 = vrcp.pop %v908
    %v912 = vmul.f32 %v902, %v911
    %913 = vst.msk [vmem:[#allocation2] sm:$0xff] %vm848, %v910
    %914 = vst.msk [vmem:[#allocation2 + $0x8] sm:$0xff] %vm848, %v912
    // Predicated region
    $region22: #{tpu_custom_call.1} parent=1 // pred_check
      _
    $region23: #{tpu_custom_call.1} parent=1 // pred_check_branch
      %916 = sbr.rel (0) target = $region25
    $region24: #{tpu_custom_call.1} parent=1 // pred_region
      %s918 = ssub.s32 256, 256
      %919 = vsyncadd [#allocation3], %s918
      %s920 = sshll.u32 [#allocation2], 4
      %s921 = int_to_ptr.vmem [resolvable:$true] %s920
      %926 = dma.vmem_to_hbm [thread:$0]  %s921, 256, %s5, [#allocation3], 128, 128, 8
    $region25: #{tpu_custom_call.1} parent=1 // pred_fallthru
      _
    // Predicated region
    $region26: #{tpu_custom_call.1} parent=1 // pred_check
      _
    $region27: #{tpu_custom_call.1} parent=1 // pred_check_branch
      %928 = sbr.rel (0) target = $region29
    $region28: #{tpu_custom_call.1} parent=1 // pred_region
      %929 = dma.done [#allocation3], 256
    $region29: #{tpu_custom_call.1} parent=1 // pred_fallthru
      _
    %930 = vsyncpa [#allocation3], 1

</llo_original>
